<compile_context>
chip_gen: v6e
topology: v6e:2x2x1
jax: 0.10.0
libtpu: 0.0.40
codegen_flags: <defaults>
</compile_context>

<pallas_src>
import functools

import jax
import jax.numpy as jnp
from jax import lax
from jax.experimental import pallas as pl
from jax.experimental.pallas import tpu as pltpu


def _round_up(a: int, m: int) -> int:
    return (a + m - 1) // m * m


def _mse_rowsum_kernel(x_ref, y_ref, o_ref, *, n_cols: int, tn: int):
    j = pl.program_id(1)

    # o_ref is the resident accumulator (same output block across the
    # reduction axis); zero it on the first reduction step.
    @pl.when(j == 0)
    def _():
        o_ref[...] = jnp.zeros_like(o_ref)

    # Compute in f32 (v5e has no bf16 VPU; also preserves sum precision).
    d = x_ref[...].astype(jnp.float32) - y_ref[...].astype(jnp.float32)

    # Ragged tail along the reduction axis: zero lanes past N.  Static Python
    # check, so the mask is only emitted when N is not a tile multiple.
    if n_cols % tn != 0:
        col = lax.broadcasted_iota(jnp.int32, d.shape, dimension=1)
        d = jnp.where(col < (n_cols - j * tn), d, 0.0)

    o_ref[...] += jnp.sum(d * d, axis=-1, keepdims=True)


def mse_loss(x, y, *, target_block_elems: int = 512 * 1024, tb_max: int = 256):
    """Pallas equivalent of MSELoss.forward: per-sample sum of squared errors."""
    assert x.shape == y.shape, "x and y must have the same shape"
    assert tb_max % 8 == 0

    if x.ndim == 1:
        # The reference's `while x.dim() > 1` loop never runs for 1-D input,
        # so the result is just the elementwise squared difference.
        return (x - y) ** 2

    B = x.shape[0]
    N = 1
    for s in x.shape[1:]:
        N *= s

    x2 = x.reshape(B, N)
    y2 = y.reshape(B, N)

    # ---- tile selection -----------------------------------------------------
    # Row tile: full batch if it fits (block == full dim is always legal),
    # otherwise a multiple-of-8 tile; ragged last row-block is handled by the
    # Pallas boundary machinery (OOB output rows are masked on store).
    TB = B if B <= tb_max else tb_max
    # Column (reduction) tile: multiple of 128, sized so each input block is
    # ~target_block_elems f32 (~2 MiB default), capped at the rounded-up N.
    tn_target = max(128, (target_block_elems // max(TB, 1)) // 128 * 128)
    TN = min(tn_target, _round_up(N, 128))

    grid = (pl.cdiv(B, TB), pl.cdiv(N, TN))

    out = pl.pallas_call(
        functools.partial(_mse_rowsum_kernel, n_cols=N, tn=TN),
        out_shape=jax.ShapeDtypeStruct((B, 1), jnp.float32),
        grid=grid,
        in_specs=[
            pl.BlockSpec((TB, TN), lambda i, j: (i, j)),
            pl.BlockSpec((TB, TN), lambda i, j: (i, j)),
        ],
        # Same output block across the reduction axis -> resident accumulator.
        out_specs=pl.BlockSpec((TB, 1), lambda i, j: (i, 0)),
        compiler_params=pltpu.CompilerParams(
            dimension_semantics=("parallel", "arbitrary"),
        ),
    )(x2, y2)

    # Match the reference's output dtype (accumulation was done in f32).
    return out[:, 0].astype(x.dtype)


if __name__ == "__main__":
    key = jax.random.PRNGKey(0)
    kx, ky = jax.random.split(key)

    # 1) NCHW input consistent with a typical conv-model loss (N = 1024).
    x = jax.random.normal(kx, (2, 4, 16, 16), dtype=jnp.float32)
    y = jax.random.normal(ky, (2, 4, 16, 16), dtype=jnp.float32)
    out = jax.block_until_ready(mse_loss(x, y))
    ref = jnp.sum((x - y) ** 2, axis=(1, 2, 3))
    assert out.shape == (2,)
    assert jnp.allclose(out, ref, rtol=1e-5, atol=1e-5)

    # 2) Multi-step reduction (resident-accumulator path): a small block
    #    target forces 4 reduction steps over N = 8*32*32 = 8192.
    k2x, k2y = jax.random.split(jax.random.PRNGKey(1))
    x2 = jax.random.normal(k2x, (16, 8, 32, 32), dtype=jnp.float32)
    y2 = jax.random.normal(k2y, (16, 8, 32, 32), dtype=jnp.float32)
    out2 = jax.block_until_ready(mse_loss(x2, y2, target_block_elems=16 * 2048))
    ref2 = jnp.sum((x2 - y2) ** 2, axis=(1, 2, 3))
    assert out2.shape == (16,)
    assert jnp.allclose(out2, ref2, rtol=1e-5, atol=1e-4)

    # 3) Ragged reduction dim (N = 5*9*7 = 315, not a multiple of 128):
    #    exercises the in-kernel tail mask (no host-side padding copies).
    k3x, k3y = jax.random.split(jax.random.PRNGKey(2))
    x3 = jax.random.normal(k3x, (3, 5, 9, 7), dtype=jnp.float32)
    y3 = jax.random.normal(k3y, (3, 5, 9, 7), dtype=jnp.float32)
    out3 = jax.block_until_ready(mse_loss(x3, y3, target_block_elems=3 * 128))
    ref3 = jnp.sum((x3 - y3) ** 2, axis=(1, 2, 3))
    assert out3.shape == (3,)
    assert jnp.allclose(out3, ref3, rtol=1e-5, atol=1e-5)

    print("KERNEL_OK")
</pallas_src>

<mosaic_0001>
module attributes {stable_mosaic.version = 11 : i64} {
  func.func @_mse_rowsum_kernel(%arg0: i32, %arg1: i32, %arg2: memref<2x1024xf32, #tpu.memory_space<vmem>>, %arg3: memref<2x1024xf32, #tpu.memory_space<vmem>>, %arg4: memref<2x1xf32, #tpu.memory_space<vmem>>) attributes {dimension_semantics = [#tpu.dimension_semantics<parallel>, #tpu.dimension_semantics<arbitrary>], iteration_bounds = array<i64: 1, 1>, scalar_prefetch = 0 : i64, scratch_operands = 0 : i64, tpu.core_type = #tpu.core_type<tc>, window_params = [{transform_indices = @transform_0, window_bounds = array<i64: 2, 1024>}, {transform_indices = @transform_1, window_bounds = array<i64: 2, 1024>}, {transform_indices = @transform_2, window_bounds = array<i64: 2, 1>}]} {
    %c0_i32 = arith.constant 0 : i32
    %0 = arith.cmpi eq, %arg1, %c0_i32 : i32
    %1 = arith.extui %0 : i1 to i32
    %c0_i32_0 = arith.constant 0 : i32
    %2 = arith.cmpi ne, %1, %c0_i32_0 : i32
    scf.if %2 {
      %cst_8 = arith.constant 0.000000e+00 : f32
      %12 = vector.broadcast %cst_8 : f32 to vector<2x1xf32>
      %c0_9 = arith.constant 0 : index
      %c0_10 = arith.constant 0 : index
      %13 = vector.load %arg4[%c0_9, %c0_10] : memref<2x1xf32, #tpu.memory_space<vmem>>, vector<2x1xf32>
      tpu.vector_store %arg4[%c0_9, %c0_10], %12 {strides = array<i32>} : memref<2x1xf32, #tpu.memory_space<vmem>>, vector<2x1xf32>,
    } else {
    }
    %c0 = arith.constant 0 : index
    %c0_1 = arith.constant 0 : index
    %3 = vector.load %arg2[%c0, %c0_1] : memref<2x1024xf32, #tpu.memory_space<vmem>>, vector<2x1024xf32>
    %c0_2 = arith.constant 0 : index
    %c0_3 = arith.constant 0 : index
    %4 = vector.load %arg3[%c0_2, %c0_3] : memref<2x1024xf32, #tpu.memory_space<vmem>>, vector<2x1024xf32>
    %5 = arith.subf %3, %4 : vector<2x1024xf32>
    %c0_4 = arith.constant 0 : index
    %c0_5 = arith.constant 0 : index
    %6 = vector.load %arg4[%c0_4, %c0_5] : memref<2x1xf32, #tpu.memory_space<vmem>>, vector<2x1xf32>
    %7 = arith.mulf %5, %5 : vector<2x1024xf32>
    %cst = arith.constant dense<0.000000e+00> : vector<2xf32>
    %8 = vector.multi_reduction <add>, %7, %cst [1] : vector<2x1024xf32> to vector<2xf32>
    %9 = vector.shape_cast %8 : vector<2xf32> to vector<2x1xf32>
    %10 = arith.addf %6, %9 : vector<2x1xf32>
    %c0_6 = arith.constant 0 : index
    %c0_7 = arith.constant 0 : index
    %11 = vector.load %arg4[%c0_6, %c0_7] : memref<2x1xf32, #tpu.memory_space<vmem>>, vector<2x1xf32>
    tpu.vector_store %arg4[%c0_6, %c0_7], %10 {strides = array<i32>} : memref<2x1xf32, #tpu.memory_space<vmem>>, vector<2x1xf32>,
    return
  }
  func.func @transform_0(%arg0: i32, %arg1: i32) -> (i32, i32) {
    %c0_i32 = arith.constant 0 : i32
    return %arg0, %arg1 : i32, i32
  }
  func.func @transform_1(%arg0: i32, %arg1: i32) -> (i32, i32) {
    %c0_i32 = arith.constant 0 : i32
    return %arg0, %arg1 : i32, i32
  }
  func.func @transform_2(%arg0: i32, %arg1: i32) -> (i32, i32) {
    %c0_i32 = arith.constant 0 : i32
    %c0_i32_0 = arith.constant 0 : i32
    return %arg0, %c0_i32 : i32, i32
  }
}

</mosaic_0001>

<llo_original>
// kernel: tpu_custom_call.1
$region0: #{tpu_custom_call.1}
  #allocation0 [shape = 'u32[]', space=smem, size = 0x4, offset = 0x4, fixed_abs, tag = 'smem constant byte address 0x4 - core index']
  #allocation1 [shape = 'u32[144,128]{1,0:T(1,128)}', space=vmem, size = 0x12000, scoped, tag = 'internal scratch']
  %s0 = inlined_call_operand.hbm [shape: f32[2,1024], index: 0, kind: input, shape index: {}]
  %s1 = inlined_call_operand.hbm [shape: f32[2,1024], index: 1, kind: input, shape index: {}]
  %s2 = inlined_call_operand.vmem [shape: f32[2,1], index: 2, kind: output, shape index: {}]
  %s3 = sld [smem:[#allocation0]]
  $region30: #{tpu_custom_call.1} parent=0
    _
  %s5 = ssub.s32 1, %s3
  %s6 = scalar_select 0, %s5, %s3
  $region1: #{tpu_custom_call.1} parent=0
    #allocation2 [shape = 'u8[8192]{0}', space=vmem, size = 0x2000, scoped, tag = 'input window, operand 0, single buffered']
    #allocation3 [shape = 's32[1]{0}', space=sflag, size = 0x4, scoped, tag = 'scoped memory for tpu_custom_call.1']
    #allocation4 [shape = 'u8[8192]{0}', space=vmem, size = 0x2000, scoped, tag = 'input window, operand 1, single buffered']
    #allocation5 [shape = 's32[1]{0}', space=sflag, size = 0x4, scoped, tag = 'scoped memory for tpu_custom_call.1']
    %7 = vsyncpa [#allocation3], 0
    %8 = vsyncpa [#allocation5], 0
    // Predicated region
    $region2: #{tpu_custom_call.1} parent=1 // pred_check
      _
    $region3: #{tpu_custom_call.1} parent=1 // pred_check_branch
      %10 = sbr.rel (0) target = $region5
    $region4: #{tpu_custom_call.1} parent=1 // pred_region
      %s12 = ssub.s32 256, 256
      %13 = vsyncadd [#allocation3], %s12
      %s15 = sshll.u32 [#allocation2], 4
      %s16 = int_to_ptr.vmem [resolvable:$true] %s15
      %18 = dma.hbm_to_vmem [thread:$0]  %s0, 256, %s16, [#allocation3]
    $region5: #{tpu_custom_call.1} parent=1 // pred_fallthru
      _
    // Predicated region
    $region6: #{tpu_custom_call.1} parent=1 // pred_check
      _
    $region7: #{tpu_custom_call.1} parent=1 // pred_check_branch
      %20 = sbr.rel (0) target = $region9
    $region8: #{tpu_custom_call.1} parent=1 // pred_region
      %s22 = ssub.s32 256, 256
      %23 = vsyncadd [#allocation5], %s22
      %s25 = sshll.u32 [#allocation4], 4
      %s26 = int_to_ptr.vmem [resolvable:$true] %s25
      %28 = dma.hbm_to_vmem [thread:$0]  %s1, 256, %s26, [#allocation5]
    $region9: #{tpu_custom_call.1} parent=1 // pred_fallthru
      _
    // Predicated region
    $region10: #{tpu_custom_call.1} parent=1 // pred_check
      _
    $region11: #{tpu_custom_call.1} parent=1 // pred_check_branch
      %30 = sbr.rel (0) target = $region13
    $region12: #{tpu_custom_call.1} parent=1 // pred_region
      %31 = dma.done [#allocation3], 256
    $region13: #{tpu_custom_call.1} parent=1 // pred_fallthru
      _
    // Predicated region
    $region14: #{tpu_custom_call.1} parent=1 // pred_check
      _
    $region15: #{tpu_custom_call.1} parent=1 // pred_check_branch
      %33 = sbr.rel (0) target = $region17
    $region16: #{tpu_custom_call.1} parent=1 // pred_region
      %34 = dma.done [#allocation5], 256
    $region17: #{tpu_custom_call.1} parent=1 // pred_fallthru
      _
    %p35 = scmp.eq.s32.totalorder 0, 0
    // Predicated region
    $region18: #{tpu_custom_call.1} parent=1 // pred_check
      %p36 = pneg %p35
    $region19: #{tpu_custom_call.1} parent=1 // pred_check_branch
      %38 = sbr.rel (%p36) target = $region21
    $region20: #{tpu_custom_call.1} parent=1 // pred_region
      %vm39 = vcmask 1024
      %40 = vst.msk [vmem:[%s2] sm:$0x3] %vm39, 0.0
    $region21: #{tpu_custom_call.1} parent=1 // pred_fallthru
      _
    %v41 = vld [vmem:[#allocation2] sm:$0xff]
    %v42 = vld [vmem:[#allocation2 + $0x8] sm:$0xff]
    %v43 = vld [vmem:[#allocation4] sm:$0xff]
    %v44 = vld [vmem:[#allocation4 + $0x8] sm:$0xff]
    %v45 = vsub.f32 %v41, %v43
    %v46 = vsub.f32 %v42, %v44
    %v47 = vld [vmem:[%s2] sm:$0x3]
    %v48 = vmul.f32 %v45, %v45
    %v49 = vmul.f32 %v46, %v46
    %v52 = vcombine.high %v48, %v48
    %v54 = vunpack.c.l.s4 1983009808
    %v55 = vunpack.c.0.s8 %v54
    %v56 = vlaneseq
    %v57 = vshrl.u32 %v56, 7
    %v58 = vsub.s32 %v55, %v57
    %v59 = vrot.slane %v48, %v58
    %v61 = vunpack.c.l.s4 1983009808
    %v62 = vunpack.c.0.s8 %v61
    %v63 = vlaneseq
    %v64 = vshrl.u32 %v63, 7
    %v65 = vsub.s32 %v62, %v64
    %v66 = vrot.slane %v52, %v65
    %v67 = vcombine.high %v59, %v59
    %v68 = vcombine.high %v66, %v66
    %v69 = vcombine.high %v49, %v49
    %v71 = vunpack.c.l.s4 1983009808
    %v72 = vunpack.c.0.s8 %v71
    %v73 = vlaneseq
    %v74 = vshrl.u32 %v73, 7
    %v75 = vsub.s32 %v72, %v74
    %v76 = vrot.slane %v49, %v75
    %v78 = vunpack.c.l.s4 1983009808
    %v79 = vunpack.c.0.s8 %v78
    %v80 = vlaneseq
    %v81 = vshrl.u32 %v80, 7
    %v82 = vsub.s32 %v79, %v81
    %v83 = vrot.slane %v69, %v82
    %v84 = vcombine.high %v76, %v76
    %v85 = vcombine.high %v83, %v83
    %vm94 = vcmask 1041408
    %v95 = vsel %vm94, %v59, 0.0
    %v96 = vsel %vm94, %v67, 0.0
    %v97 = vadd.f32 %v95, %v96
    %v98 = vsel %vm94, %v66, 0.0
    %v99 = vadd.f32 %v97, %v98
    %v100 = vsel %vm94, %v68, 0.0
    %v101 = vadd.f32 %v99, %v100
    %v102 = vsel %vm94, %v76, 0.0
    %v103 = vadd.f32 %v101, %v102
    %v104 = vsel %vm94, %v84, 0.0
    %v105 = vadd.f32 %v103, %v104
    %v106 = vsel %vm94, %v83, 0.0
    %v107 = vadd.f32 %v105, %v106
    %v108 = vsel %vm94, %v85, 0.0
    %v109 = vadd.f32 %v107, %v108
    %110 = vadd.xlane.f32.xlu0 %v109
    %v111 = vpop.xlane.xlu0 %110
    %v112 = vadd.f32 %v47, %v111
    %vm113 = vcmask 1024
    %114 = vst.msk [vmem:[%s2] sm:$0x3] %vm113, %v112
    // Predicated region
    $region22: #{tpu_custom_call.1} parent=1 // pred_check
      _
    $region23: #{tpu_custom_call.1} parent=1 // pred_check_branch
      %116 = sbr.rel (0) target = $region25
    $region24: #{tpu_custom_call.1} parent=1 // pred_region
      _
    $region25: #{tpu_custom_call.1} parent=1 // pred_fallthru
      _
    // Predicated region
    $region26: #{tpu_custom_call.1} parent=1 // pred_check
      _
    $region27: #{tpu_custom_call.1} parent=1 // pred_check_branch
      %118 = sbr.rel (0) target = $region29
    $region28: #{tpu_custom_call.1} parent=1 // pred_region
      _
    $region29: #{tpu_custom_call.1} parent=1 // pred_fallthru
      _
    %119 = vsyncpa [#allocation3], 1
    %120 = vsyncpa [#allocation5], 1

</llo_original>
